<compile_context>
chip_gen: v6e
topology: v6e:2x2x1
jax: 0.10.0
libtpu: 0.0.40
codegen_flags: <defaults>
</compile_context>

<pallas_src>
import functools

import jax
import jax.numpy as jnp
from jax.experimental import pallas as pl
from jax.experimental.pallas import tpu as pltpu

_EPS = 1e-6
# 32768 lanes/block: pred (24 pad x 32768 x 4B) x2 bufs = 6 MiB, target 2 MiB,
# weight + out ~4 MiB -> ~12 MiB total, under v5e's 16 MiB scoped-VMEM default.
_MAX_TILE_N = 32768


def _bbox_giou_loss_rows(p_ref, t_ref):
    """Per-sample (1 - GIoU) for one block.

    p_ref: (18, T) predicted points, interleaved x/y on sublanes, samples on lanes.
    t_ref: (8,  T) target corners,   interleaved x/y on sublanes, samples on lanes.
    Returns (1, T) float32.
    """
    # --- sublane-dense tree min/max over the 9 pred points ------------------
    # Because x/y are interleaved (x on even rows, y on odd rows) and every
    # halving folds an EVEN number of rows, x stays on even and y on odd rows
    # at every level, so one min/max chain reduces both coordinates at once.
    p_lo = p_ref[0:8, :]           # [x0 y0 x1 y1 x2 y2 x3 y3]
    p_hi = p_ref[8:16, :]          # [x4 y4 x5 y5 x6 y6 x7 y7]
    p_tail = p_ref[16:18, :]       # [x8 y8]

    pmn = jnp.minimum(p_lo, p_hi)                      # (8, T)
    pmx = jnp.maximum(p_lo, p_hi)
    pmn = jnp.minimum(pmn[0:4, :], pmn[4:8, :])        # (4, T)
    pmx = jnp.maximum(pmx[0:4, :], pmx[4:8, :])
    pmn = jnp.minimum(pmn[0:2, :], pmn[2:4, :])        # (2, T)
    pmx = jnp.maximum(pmx[0:2, :], pmx[2:4, :])
    p_min = jnp.minimum(pmn, p_tail)                   # (2, T) = [x_min; y_min]
    p_max = jnp.maximum(pmx, p_tail)                   # (2, T) = [x_max; y_max]

    # --- 2-level tree over the 4 target corners ------------------------------
    t_lo = t_ref[0:4, :]           # [x0 y0 x1 y1]
    t_hi = t_ref[4:8, :]           # [x2 y2 x3 y3]
    tmn = jnp.minimum(t_lo, t_hi)                      # (4, T)
    tmx = jnp.maximum(t_lo, t_hi)
    t_min = jnp.minimum(tmn[0:2, :], tmn[2:4, :])      # (2, T)
    t_max = jnp.maximum(tmx[0:2, :], tmx[2:4, :])

    eps = jnp.float32(_EPS)

    # --- GIoU arithmetic kept at 2 live sublanes ([w; h] stacked) -----------
    inter_wh = jnp.maximum(
        jnp.minimum(p_max, t_max) - jnp.maximum(p_min, t_min), 0.0)     # (2, T)
    enclose_wh = jnp.maximum(p_max, t_max) - jnp.minimum(p_min, t_min)  # (2, T)
    pred_wh = p_max - p_min                                             # (2, T)
    targ_wh = t_max - t_min                                             # (2, T)

    # Collapse [w; h] -> w*h only at the very end (four (1, T) products).
    inter = inter_wh[0:1, :] * inter_wh[1:2, :]
    area_p = pred_wh[0:1, :] * pred_wh[1:2, :]
    area_t = targ_wh[0:1, :] * targ_wh[1:2, :]
    enclose = enclose_wh[0:1, :] * enclose_wh[1:2, :] + eps

    union = area_p + area_t - inter + eps
    # giou = inter/union - (enclose - union)/enclose = inter/union + union/enclose - 1
    # loss = 1 - giou = 2 - inter/union - union/enclose   (exact divides -> EUP slot)
    return 2.0 - inter / union - union / enclose         # (1, T)


def _make_giou_kernel(has_weight, reduce_in_kernel, n_total, tile_n):
    """Build the kernel body for the given (static) configuration."""

    def kernel(*refs):
        if has_weight:
            p_ref, t_ref, w_ref, out_ref = refs
        else:
            p_ref, t_ref, out_ref = refs

        loss = _bbox_giou_loss_rows(p_ref, t_ref)        # (1, tile_n)
        if has_weight:
            loss = loss * w_ref[...]

        if reduce_in_kernel:
            # Padded lanes of a partial last block contain garbage; mask them
            # out before accumulating (only needed when n % tile_n != 0).
            if n_total % tile_n != 0:
                col = jax.lax.broadcasted_iota(jnp.int32, (1, tile_n), 1)
                start = pl.program_id(0) * tile_n
                loss = jnp.where(start + col < n_total, loss, 0.0)

            @pl.when(pl.program_id(0) == 0)
            def _():
                out_ref[...] = jnp.zeros_like(out_ref)

            out_ref[...] += loss                          # lane-wise partial sums
        else:
            out_ref[...] = loss                           # per-row loss, lane-dense

    return kernel


@functools.partial(
    jax.jit, static_argnames=("reduction", "loss_weight", "coords_major"))
def _giou_loss_pallas(pred, target, weight, reduction, loss_weight,
                      coords_major=False):
    if coords_major:
        pred_t = pred.astype(jnp.float32)      # (18, N) already coords-major
        target_t = target.astype(jnp.float32)  # (8, N)
    else:
        # TODO(synk): this relayout is a full extra HBM read+write pass; callers
        # that can produce coords-major (18, N)/(8, N) upstream should set
        # coords_major=True to skip it (biggest end-to-end win on v5e/v6e).
        pred_t = pred.astype(jnp.float32).T      # (18, N)
        target_t = target.astype(jnp.float32).T  # (8, N)

    n = pred_t.shape[1]
    # Full-extent block (exempt from 128-divisibility) or a 128-multiple tile.
    tile_n = n if n <= _MAX_TILE_N else _MAX_TILE_N
    grid = (pl.cdiv(n, tile_n),)

    in_specs = [
        pl.BlockSpec((18, tile_n), lambda i: (0, i)),
        pl.BlockSpec((8, tile_n), lambda i: (0, i)),
    ]
    args = [pred_t, target_t]

    has_weight = weight is not None
    if has_weight:
        args.append(weight.astype(jnp.float32).reshape(1, n))  # samples on lanes
        in_specs.append(pl.BlockSpec((1, tile_n), lambda i: (0, i)))

    reduce_in_kernel = reduction in ("sum", "mean")
    if reduce_in_kernel:
        # VMEM-resident accumulator block: only tile_n floats ever reach HBM,
        # the final reduce over tile_n elements is a tiny XLA op.
        out_specs = pl.BlockSpec((1, tile_n), lambda i: (0, 0))
        out_shape = jax.ShapeDtypeStruct((1, tile_n), jnp.float32)
        semantics = ("arbitrary",)   # grid axis carries the accumulator
    else:
        out_specs = pl.BlockSpec((1, tile_n), lambda i: (0, i))
        out_shape = jax.ShapeDtypeStruct((1, n), jnp.float32)
        semantics = ("parallel",)    # embarrassingly parallel rows

    out = pl.pallas_call(
        _make_giou_kernel(has_weight, reduce_in_kernel, n, tile_n),
        grid=grid,
        in_specs=in_specs,
        out_specs=out_specs,
        out_shape=out_shape,
        compiler_params=pltpu.CompilerParams(dimension_semantics=semantics),
    )(*args)

    if reduction == "sum":
        loss = jnp.sum(out[0])
    elif reduction == "mean":
        loss = jnp.sum(out[0]) / jnp.float32(n)
    else:  # 'none'
        loss = out[0]
    return jnp.float32(loss_weight) * loss


class GIoULoss:
    """JAX/Pallas port of mmdet's convex GIoULoss (forward only)."""

    def __init__(self, reduction="mean", loss_weight=1.0):
        self.reduction = reduction
        self.loss_weight = loss_weight

    def __call__(self, pred, target, weight=None, avg_factor=None,
                 reduction_override=None, coords_major=False):
        assert reduction_override in (None, "none", "mean", "sum")
        reduction = reduction_override if reduction_override else self.reduction
        # NOTE: avg_factor is accepted but unused, matching the reference
        #       GIoULossFuction.forward (it reduces with .mean()/.sum() only).
        # NOTE: the PyTorch early-exit `if weight is not None and not any(weight>0)`
        #       is data-dependent; when all weights are zero the weighted path below
        #       also yields 0 for 'sum'/'mean' (shape differs only for 'none').
        return _giou_loss_pallas(pred, target, weight, reduction,
                                 self.loss_weight, coords_major=coords_major)


if __name__ == "__main__":
    key = jax.random.PRNGKey(0)
    n = 64  # number of samples (rows)

    k1, k2, k3, k4 = jax.random.split(key, 4)

    # Predicted point sets: 9 (x, y) points per sample, interleaved -> (N, 18).
    centers = jax.random.uniform(k1, (n, 1, 2), minval=2.0, maxval=10.0)
    pred_pts = centers + jax.random.normal(k2, (n, 9, 2)) * 1.5
    pred = pred_pts.reshape(n, 18).astype(jnp.float32)

    # Target quadrilaterals: 4 (x, y) corners per sample, interleaved -> (N, 8).
    tgt_centers = centers[:, 0, :] + jax.random.normal(k3, (n, 2)) * 0.5
    half = jax.random.uniform(k4, (n, 2), minval=1.0, maxval=3.0)
    x1 = tgt_centers[:, 0] - half[:, 0]
    y1 = tgt_centers[:, 1] - half[:, 1]
    x2 = tgt_centers[:, 0] + half[:, 0]
    y2 = tgt_centers[:, 1] + half[:, 1]
    target = jnp.stack([x1, y1, x2, y1, x2, y2, x1, y2], axis=-1).astype(jnp.float32)

    loss_fn = GIoULoss(reduction="mean", loss_weight=1.0)
    loss = loss_fn(pred, target)
    loss = jax.block_until_ready(loss)
    assert loss.shape == () and jnp.isfinite(loss)

    # Also exercise 'none' and 'sum' reductions + per-sample weights.
    weight = jnp.ones((n,), jnp.float32)
    loss_none = jax.block_until_ready(
        loss_fn(pred, target, weight=weight, reduction_override="none"))
    loss_sum = jax.block_until_ready(
        loss_fn(pred, target, weight=weight, reduction_override="sum"))
    assert loss_none.shape == (n,)
    assert abs(float(loss_sum) / n - float(loss)) < 1e-4
    assert abs(float(jnp.sum(loss_none)) - float(loss_sum)) < 1e-3

    # Coords-major fast path (skips the wrapper transpose) must agree.
    loss_cm = jax.block_until_ready(
        loss_fn(pred.T, target.T, coords_major=True))
    assert abs(float(loss_cm) - float(loss)) < 1e-5

    print("KERNEL_OK")
</pallas_src>

<mosaic_0001>
module attributes {stable_mosaic.version = 11 : i64} {
  func.func @kernel(%arg0: i32, %arg1: memref<18x64xf32, #tpu.memory_space<vmem>>, %arg2: memref<8x64xf32, #tpu.memory_space<vmem>>, %arg3: memref<1x64xf32, #tpu.memory_space<vmem>>) attributes {dimension_semantics = [#tpu.dimension_semantics<arbitrary>], iteration_bounds = array<i64: 1>, scalar_prefetch = 0 : i64, scratch_operands = 0 : i64, tpu.core_type = #tpu.core_type<tc>, window_params = [{transform_indices = @transform_0, window_bounds = array<i64: 18, 64>}, {transform_indices = @transform_1, window_bounds = array<i64: 8, 64>}, {pipeline_mode = #tpu.pipeline_mode<synchronous>, transform_indices = @transform_2, window_bounds = array<i64: 1, 64>}]} {
    %c0 = arith.constant 0 : index
    %c0_0 = arith.constant 0 : index
    %0 = vector.load %arg1[%c0, %c0_0] : memref<18x64xf32, #tpu.memory_space<vmem>>, vector<8x64xf32>
    %c8 = arith.constant 8 : index
    %c0_1 = arith.constant 0 : index
    %1 = vector.load %arg1[%c8, %c0_1] : memref<18x64xf32, #tpu.memory_space<vmem>>, vector<8x64xf32>
    %c16 = arith.constant 16 : index
    %c0_2 = arith.constant 0 : index
    %2 = vector.load %arg1[%c16, %c0_2] : memref<18x64xf32, #tpu.memory_space<vmem>>, vector<2x64xf32>
    %3 = arith.minimumf %0, %1 : vector<8x64xf32>
    %4 = arith.maximumf %0, %1 : vector<8x64xf32>
    %5 = vector.extract_strided_slice %3 {offsets = [0, 0], sizes = [4, 64], strides = [1, 1]} : vector<8x64xf32> to vector<4x64xf32>
    %6 = vector.extract_strided_slice %3 {offsets = [4, 0], sizes = [4, 64], strides = [1, 1]} : vector<8x64xf32> to vector<4x64xf32>
    %7 = arith.minimumf %5, %6 : vector<4x64xf32>
    %8 = vector.extract_strided_slice %4 {offsets = [0, 0], sizes = [4, 64], strides = [1, 1]} : vector<8x64xf32> to vector<4x64xf32>
    %9 = vector.extract_strided_slice %4 {offsets = [4, 0], sizes = [4, 64], strides = [1, 1]} : vector<8x64xf32> to vector<4x64xf32>
    %10 = arith.maximumf %8, %9 : vector<4x64xf32>
    %11 = vector.extract_strided_slice %7 {offsets = [0, 0], sizes = [2, 64], strides = [1, 1]} : vector<4x64xf32> to vector<2x64xf32>
    %12 = vector.extract_strided_slice %7 {offsets = [2, 0], sizes = [2, 64], strides = [1, 1]} : vector<4x64xf32> to vector<2x64xf32>
    %13 = arith.minimumf %11, %12 : vector<2x64xf32>
    %14 = vector.extract_strided_slice %10 {offsets = [0, 0], sizes = [2, 64], strides = [1, 1]} : vector<4x64xf32> to vector<2x64xf32>
    %15 = vector.extract_strided_slice %10 {offsets = [2, 0], sizes = [2, 64], strides = [1, 1]} : vector<4x64xf32> to vector<2x64xf32>
    %16 = arith.maximumf %14, %15 : vector<2x64xf32>
    %17 = arith.minimumf %13, %2 : vector<2x64xf32>
    %18 = arith.maximumf %16, %2 : vector<2x64xf32>
    %c0_3 = arith.constant 0 : index
    %c0_4 = arith.constant 0 : index
    %19 = vector.load %arg2[%c0_3, %c0_4] : memref<8x64xf32, #tpu.memory_space<vmem>>, vector<4x64xf32>
    %c4 = arith.constant 4 : index
    %c0_5 = arith.constant 0 : index
    %20 = vector.load %arg2[%c4, %c0_5] : memref<8x64xf32, #tpu.memory_space<vmem>>, vector<4x64xf32>
    %21 = arith.minimumf %19, %20 : vector<4x64xf32>
    %22 = arith.maximumf %19, %20 : vector<4x64xf32>
    %23 = vector.extract_strided_slice %21 {offsets = [0, 0], sizes = [2, 64], strides = [1, 1]} : vector<4x64xf32> to vector<2x64xf32>
    %24 = vector.extract_strided_slice %21 {offsets = [2, 0], sizes = [2, 64], strides = [1, 1]} : vector<4x64xf32> to vector<2x64xf32>
    %25 = arith.minimumf %23, %24 : vector<2x64xf32>
    %26 = vector.extract_strided_slice %22 {offsets = [0, 0], sizes = [2, 64], strides = [1, 1]} : vector<4x64xf32> to vector<2x64xf32>
    %27 = vector.extract_strided_slice %22 {offsets = [2, 0], sizes = [2, 64], strides = [1, 1]} : vector<4x64xf32> to vector<2x64xf32>
    %28 = arith.maximumf %26, %27 : vector<2x64xf32>
    %29 = arith.minimumf %18, %28 : vector<2x64xf32>
    %30 = arith.maximumf %17, %25 : vector<2x64xf32>
    %31 = arith.subf %29, %30 : vector<2x64xf32>
    %cst = arith.constant 0.000000e+00 : f32
    %32 = vector.broadcast %cst : f32 to vector<2x64xf32>
    %33 = arith.maximumf %31, %32 : vector<2x64xf32>
    %34 = arith.maximumf %18, %28 : vector<2x64xf32>
    %35 = arith.minimumf %17, %25 : vector<2x64xf32>
    %36 = arith.subf %34, %35 : vector<2x64xf32>
    %37 = arith.subf %18, %17 : vector<2x64xf32>
    %38 = arith.subf %28, %25 : vector<2x64xf32>
    %39 = vector.extract_strided_slice %33 {offsets = [0, 0], sizes = [1, 64], strides = [1, 1]} : vector<2x64xf32> to vector<1x64xf32>
    %40 = vector.extract_strided_slice %33 {offsets = [1, 0], sizes = [1, 64], strides = [1, 1]} : vector<2x64xf32> to vector<1x64xf32>
    %41 = arith.mulf %39, %40 : vector<1x64xf32>
    %42 = vector.extract_strided_slice %37 {offsets = [0, 0], sizes = [1, 64], strides = [1, 1]} : vector<2x64xf32> to vector<1x64xf32>
    %43 = vector.extract_strided_slice %37 {offsets = [1, 0], sizes = [1, 64], strides = [1, 1]} : vector<2x64xf32> to vector<1x64xf32>
    %44 = arith.mulf %42, %43 : vector<1x64xf32>
    %45 = vector.extract_strided_slice %38 {offsets = [0, 0], sizes = [1, 64], strides = [1, 1]} : vector<2x64xf32> to vector<1x64xf32>
    %46 = vector.extract_strided_slice %38 {offsets = [1, 0], sizes = [1, 64], strides = [1, 1]} : vector<2x64xf32> to vector<1x64xf32>
    %47 = arith.mulf %45, %46 : vector<1x64xf32>
    %48 = vector.extract_strided_slice %36 {offsets = [0, 0], sizes = [1, 64], strides = [1, 1]} : vector<2x64xf32> to vector<1x64xf32>
    %49 = vector.extract_strided_slice %36 {offsets = [1, 0], sizes = [1, 64], strides = [1, 1]} : vector<2x64xf32> to vector<1x64xf32>
    %50 = arith.mulf %48, %49 : vector<1x64xf32>
    %cst_6 = arith.constant 9.99999997E-7 : f32
    %51 = vector.broadcast %cst_6 : f32 to vector<1x64xf32>
    %52 = arith.addf %50, %51 : vector<1x64xf32>
    %53 = arith.addf %44, %47 : vector<1x64xf32>
    %54 = arith.subf %53, %41 : vector<1x64xf32>
    %cst_7 = arith.constant 9.99999997E-7 : f32
    %55 = vector.broadcast %cst_7 : f32 to vector<1x64xf32>
    %56 = arith.addf %54, %55 : vector<1x64xf32>
    %57 = arith.divf %41, %56 : vector<1x64xf32>
    %cst_8 = arith.constant 2.000000e+00 : f32
    %58 = vector.broadcast %cst_8 : f32 to vector<1x64xf32>
    %59 = arith.subf %58, %57 : vector<1x64xf32>
    %60 = arith.divf %56, %52 : vector<1x64xf32>
    %61 = arith.subf %59, %60 : vector<1x64xf32>
    %c0_i32 = arith.constant 0 : i32
    %62 = arith.cmpi eq, %arg0, %c0_i32 : i32
    %63 = arith.extui %62 : i1 to i32
    %c0_i32_9 = arith.constant 0 : i32
    %64 = arith.cmpi ne, %63, %c0_i32_9 : i32
    scf.if %64 {
      %cst_14 = arith.constant 0.000000e+00 : f32
      %68 = vector.broadcast %cst_14 : f32 to vector<1x64xf32>
      %c0_15 = arith.constant 0 : index
      %c0_16 = arith.constant 0 : index
      %69 = vector.load %arg3[%c0_15, %c0_16] : memref<1x64xf32, #tpu.memory_space<vmem>>, vector<1x64xf32>
      tpu.vector_store %arg3[%c0_15, %c0_16], %68 {strides = array<i32>} : memref<1x64xf32, #tpu.memory_space<vmem>>, vector<1x64xf32>,
    } else {
    }
    %c0_10 = arith.constant 0 : index
    %c0_11 = arith.constant 0 : index
    %65 = vector.load %arg3[%c0_10, %c0_11] : memref<1x64xf32, #tpu.memory_space<vmem>>, vector<1x64xf32>
    %66 = arith.addf %65, %61 : vector<1x64xf32>
    %c0_12 = arith.constant 0 : index
    %c0_13 = arith.constant 0 : index
    %67 = vector.load %arg3[%c0_12, %c0_13] : memref<1x64xf32, #tpu.memory_space<vmem>>, vector<1x64xf32>
    tpu.vector_store %arg3[%c0_12, %c0_13], %66 {strides = array<i32>} : memref<1x64xf32, #tpu.memory_space<vmem>>, vector<1x64xf32>,
    return
  }
  func.func @transform_0(%arg0: i32) -> (i32, i32) {
    %c0_i32 = arith.constant 0 : i32
    %c0_i32_0 = arith.constant 0 : i32
    return %c0_i32, %arg0 : i32, i32
  }
  func.func @transform_1(%arg0: i32) -> (i32, i32) {
    %c0_i32 = arith.constant 0 : i32
    %c0_i32_0 = arith.constant 0 : i32
    return %c0_i32, %arg0 : i32, i32
  }
  func.func @transform_2(%arg0: i32) -> (i32, i32) {
    %c0_i32 = arith.constant 0 : i32
    %c0_i32_0 = arith.constant 0 : i32
    %c0_i32_1 = arith.constant 0 : i32
    return %c0_i32, %c0_i32_0 : i32, i32
  }
}

</mosaic_0001>

<llo_original>
// kernel: _giou_loss_pallas.1
$region0: #{_giou_loss_pallas.1}
  #allocation0 [shape = 'u32[]', space=smem, size = 0x4, offset = 0x4, fixed_abs, tag = 'smem constant byte address 0x4 - core index']
  #allocation1 [shape = 'u32[144,128]{1,0:T(1,128)}', space=vmem, size = 0x12000, scoped, tag = 'internal scratch']
  %s0 = inlined_call_operand.hbm [shape: f32[18,64], index: 0, kind: input, shape index: {}]
  %s1 = inlined_call_operand.hbm [shape: f32[8,64], index: 1, kind: input, shape index: {}]
  %s2 = inlined_call_operand.vmem [shape: f32[1,64], index: 2, kind: output, shape index: {}]
  %s3 = sld [smem:[#allocation0]]
  $region30: #{_giou_loss_pallas.1} parent=0
    _
  %s5 = ssub.s32 1, %s3
  %s6 = scalar_select 0, %s5, %s3
  $region1: #{_giou_loss_pallas.1} parent=0
    #allocation2 [shape = 'u8[12288]{0}', space=vmem, size = 0x3000, scoped, tag = 'input window, operand 0, single buffered']
    #allocation3 [shape = 's32[1]{0}', space=sflag, size = 0x4, scoped, tag = 'scoped memory for _giou_loss_pallas.1']
    #allocation4 [shape = 'u8[4096]{0}', space=vmem, size = 0x1000, scoped, tag = 'input window, operand 1, single buffered']
    #allocation5 [shape = 's32[1]{0}', space=sflag, size = 0x4, scoped, tag = 'scoped memory for _giou_loss_pallas.1']
    %7 = vsyncpa [#allocation3], 0
    %8 = vsyncpa [#allocation5], 0
    // Predicated region
    $region2: #{_giou_loss_pallas.1} parent=1 // pred_check
      _
    $region3: #{_giou_loss_pallas.1} parent=1 // pred_check_branch
      %10 = sbr.rel (0) target = $region5
    $region4: #{_giou_loss_pallas.1} parent=1 // pred_region
      %s12 = ssub.s32 384, 384
      %13 = vsyncadd [#allocation3], %s12
      %s14 = sshll.u32 [#allocation2], 4
      %s15 = int_to_ptr.vmem [resolvable:$true] %s14
      %20 = dma.hbm_to_vmem [thread:$0]  %s0, 384, %s15, [#allocation3], 128, 128, 8
    $region5: #{_giou_loss_pallas.1} parent=1 // pred_fallthru
      _
    // Predicated region
    $region6: #{_giou_loss_pallas.1} parent=1 // pred_check
      _
    $region7: #{_giou_loss_pallas.1} parent=1 // pred_check_branch
      %22 = sbr.rel (0) target = $region9
    $region8: #{_giou_loss_pallas.1} parent=1 // pred_region
      %s24 = ssub.s32 128, 128
      %25 = vsyncadd [#allocation5], %s24
      %s27 = sshll.u32 [#allocation4], 4
      %s28 = int_to_ptr.vmem [resolvable:$true] %s27
      %30 = dma.hbm_to_vmem [thread:$0]  %s1, 128, %s28, [#allocation5]
    $region9: #{_giou_loss_pallas.1} parent=1 // pred_fallthru
      _
    // Predicated region
    $region10: #{_giou_loss_pallas.1} parent=1 // pred_check
      _
    $region11: #{_giou_loss_pallas.1} parent=1 // pred_check_branch
      %32 = sbr.rel (0) target = $region13
    $region12: #{_giou_loss_pallas.1} parent=1 // pred_region
      %33 = dma.done [#allocation3], 384
    $region13: #{_giou_loss_pallas.1} parent=1 // pred_fallthru
      _
    // Predicated region
    $region14: #{_giou_loss_pallas.1} parent=1 // pred_check
      _
    $region15: #{_giou_loss_pallas.1} parent=1 // pred_check_branch
      %35 = sbr.rel (0) target = $region17
    $region16: #{_giou_loss_pallas.1} parent=1 // pred_region
      %36 = dma.done [#allocation5], 128
    $region17: #{_giou_loss_pallas.1} parent=1 // pred_fallthru
      _
    %v37 = vld [vmem:[#allocation2] sm:$0xff]
    %v38 = vld [vmem:[#allocation2 + $0x8] sm:$0xff]
    %v39 = vld [vmem:[#allocation2 + $0x10] sm:$0x3]
    %v40 = vmin.f32 %v37, %v38
    %v41 = vmax.f32 %v37, %v38
    %v43 = vrot.slane %v40, 4
    %v45 = vmin.f32 %v40, %v43
    %v47 = vrot.slane %v41, 4
    %v49 = vmax.f32 %v41, %v47
    %v51 = vrot.slane %v45, 2
    %v53 = vmin.f32 %v45, %v51
    %v55 = vrot.slane %v49, 2
    %v57 = vmax.f32 %v49, %v55
    %v58 = vmin.f32 %v53, %v39
    %v59 = vmax.f32 %v57, %v39
    %v60 = vld [vmem:[#allocation4] sm:$0xf]
    %v61 = vld [vmem:[#allocation4 + $0x4] sm:$0xf]
    %v62 = vmin.f32 %v60, %v61
    %v63 = vmax.f32 %v60, %v61
    %v65 = vrot.slane %v62, 2
    %v67 = vmin.f32 %v62, %v65
    %v69 = vrot.slane %v63, 2
    %v71 = vmax.f32 %v63, %v69
    %v72 = vmin.f32 %v59, %v71
    %v73 = vmax.f32 %v58, %v67
    %v74 = vsub.f32 %v72, %v73
    %v75 = vmax.f32 %v74, 0.0
    %v76 = vmax.f32 %v59, %v71
    %v77 = vmin.f32 %v58, %v67
    %v78 = vsub.f32 %v76, %v77
    %v79 = vsub.f32 %v59, %v58
    %v80 = vsub.f32 %v71, %v67
    %v82 = vrot.slane %v75, 1
    %v84 = vmul.f32 %v75, %v82
    %v86 = vrot.slane %v79, 1
    %v88 = vmul.f32 %v79, %v86
    %v90 = vrot.slane %v80, 1
    %v92 = vmul.f32 %v80, %v90
    %v94 = vrot.slane %v78, 1
    %v96 = vmul.f32 %v78, %v94
    %v97 = vadd.f32 %v96, 1e-06
    %v98 = vadd.f32 %v88, %v92
    %v99 = vsub.f32 %v98, %v84
    %v100 = vadd.f32 %v99, 1e-06
    %v101 = vrcp.pop %v100
    %v102 = vmul.f32 %v84, %v101
    %v103 = vsub.f32 2.0, %v102
    %v104 = vrcp.pop %v97
    %v105 = vmul.f32 %v100, %v104
    %v106 = vsub.f32 %v103, %v105
    %p107 = scmp.eq.s32.totalorder 0, 0
    // Predicated region
    $region18: #{_giou_loss_pallas.1} parent=1 // pred_check
      %p108 = pneg %p107
    $region19: #{_giou_loss_pallas.1} parent=1 // pred_check_branch
      %110 = sbr.rel (%p108) target = $region21
    $region20: #{_giou_loss_pallas.1} parent=1 // pred_region
      %vm111 = vcmask 516096
      %112 = vst.msk [vmem:[%s2] sm:$0x1] %vm111, 0.0
    $region21: #{_giou_loss_pallas.1} parent=1 // pred_fallthru
      _
    %v113 = vld [vmem:[%s2] sm:$0x1]
    %v114 = vadd.f32 %v113, %v106
    %vm115 = vcmask 516096
    %116 = vst.msk [vmem:[%s2] sm:$0x1] %vm115, %v114
    // Predicated region
    $region22: #{_giou_loss_pallas.1} parent=1 // pred_check
      _
    $region23: #{_giou_loss_pallas.1} parent=1 // pred_check_branch
      %118 = sbr.rel (0) target = $region25
    $region24: #{_giou_loss_pallas.1} parent=1 // pred_region
      _
    $region25: #{_giou_loss_pallas.1} parent=1 // pred_fallthru
      _
    // Predicated region
    $region26: #{_giou_loss_pallas.1} parent=1 // pred_check
      _
    $region27: #{_giou_loss_pallas.1} parent=1 // pred_check_branch
      %120 = sbr.rel (0) target = $region29
    $region28: #{_giou_loss_pallas.1} parent=1 // pred_region
      _
    $region29: #{_giou_loss_pallas.1} parent=1 // pred_fallthru
      _
    %121 = vsyncpa [#allocation3], 1
    %122 = vsyncpa [#allocation5], 1

</llo_original>
